<compile_context>
chip_gen: v7x
topology: tpu7x:2x2x1
jax: 0.10.0
libtpu: 0.0.40
codegen_flags: <defaults>
</compile_context>

<pallas_src>
import jax
import jax.numpy as jnp
from jax.experimental import pallas as pl
from jax.experimental.pallas import tpu as pltpu

IN_RGB_MEAN = [0.485, 0.456, 0.406]
IN_RGB_STD = [0.229, 0.224, 0.225]
MY_RGB_MEAN = [0.459, 0.448, 0.409]
MY_RGB_STD = [0.23, 0.226, 0.24]
DIFF_RGB_MEAN = [IN_RGB_MEAN[i] - MY_RGB_MEAN[i] for i in range(3)]
DIFF_RGB_STD = [IN_RGB_STD[i] + MY_RGB_STD[i] for i in range(3)]  # unused by forward (as in torch)


def _noise_kernel(rgb_ref, gt_ref, upos_ref, uneg_ref, out_ref):
    """rgb_ref/out_ref: (1, 3, TH, W) f32; gt_ref/upos_ref/uneg_ref: (1, 1, TH, W) f32."""
    gt_mask = gt_ref[0, 0] != jnp.float32(0.0)               # (TH, W) bool
    # pos/neg masks are complementary per pixel -> exactly one noise survives.
    noise = jnp.where(gt_mask, upos_ref[0, 0], uneg_ref[0, 0])  # (TH, W)
    # Per-channel scale by diff_rgb_mean[c] and add to rgb (unrolled over 3 channels).
    for c in range(3):
        out_ref[0, c] = rgb_ref[0, c] + noise * jnp.float32(DIFF_RGB_MEAN[c])


def _choose_row_tile(H, W, C, vmem_budget_bytes=8 * 1024 * 1024):
    """Pick a row tile TH (multiple of 8, dividing H) that keeps all
    double-buffered blocks under a conservative VMEM budget (fits v5e's 16 MiB
    default scoped VMEM and v7x's smaller physical VMEM)."""
    if H % 8 != 0:
        return H  # fall back to full-H blocks (block dim == full array dim is always legal)
    # bytes resident per row: rgb(C*4) + out(C*4) + gt(4) + u_pos(4) + u_neg(4), x2 buffers
    per_row = (2 * C * 4 + 3 * 4) * W * 2
    th = max(8, min(H, vmem_budget_bytes // max(per_row, 1)))
    th = max(8, (th // 8) * 8)
    while H % th != 0:  # terminates at 8 since 8 | H
        th -= 8
    return th


def noise_pallas(rgb, gt, u_pos, u_neg, row_tile=None):
    """rgb: (N,3,H,W) f32; gt: (N,1,H,W) f32 (nonzero == True);
    u_pos/u_neg: (N,1,H,W) f32 uniforms in [0,1)."""
    N, C, H, W = rgb.shape
    assert C == 3 and gt.shape == (N, 1, H, W)
    assert u_pos.shape == (N, 1, H, W) and u_neg.shape == (N, 1, H, W)

    TH = row_tile if row_tile is not None else _choose_row_tile(H, W, C)
    assert H % TH == 0, "row tile must divide H"
    grid = (N, pl.cdiv(H, TH))

    img_spec = pl.BlockSpec((1, C, TH, W), lambda b, h: (b, 0, h, 0))
    msk_spec = pl.BlockSpec((1, 1, TH, W), lambda b, h: (b, 0, h, 0))

    return pl.pallas_call(
        _noise_kernel,
        out_shape=jax.ShapeDtypeStruct((N, C, H, W), rgb.dtype),
        grid=grid,
        in_specs=[img_spec, msk_spec, msk_spec, msk_spec],
        out_specs=img_spec,
        compiler_params=pltpu.CompilerParams(
            # purely elementwise, no carried state -> both axes parallel (v7x megacore)
            dimension_semantics=("parallel", "parallel"),
        ),
    )(rgb, gt, u_pos, u_neg)


def noise_forward(rgb, gt, key):
    """Full module forward: draws the two uniform fields (torch.rand analog)
    with jax.random, then runs the fused Pallas kernel."""
    N, _, H, W = rgb.shape
    k1, k2 = jax.random.split(key)
    u_pos = jax.random.uniform(k1, (N, 1, H, W), dtype=rgb.dtype)
    u_neg = jax.random.uniform(k2, (N, 1, H, W), dtype=rgb.dtype)
    return noise_pallas(rgb, gt, u_pos, u_neg)


if __name__ == "__main__":
    key = jax.random.PRNGKey(0)
    k_rgb, k_gt, k_up, k_un = jax.random.split(key, 4)

    N, C, H, W = 2, 3, 16, 256  # small, lane-aligned spatial size (W multiple of 128)
    rgb = jax.random.normal(k_rgb, (N, C, H, W), dtype=jnp.float32)
    gt = (jax.random.uniform(k_gt, (N, 1, H, W)) > 0.5).astype(jnp.float32)
    u_pos = jax.random.uniform(k_up, (N, 1, H, W), dtype=jnp.float32)
    u_neg = jax.random.uniform(k_un, (N, 1, H, W), dtype=jnp.float32)

    # Force the row-tiled path (TH=8 -> grid (2, 2)).
    out = noise_pallas(rgb, gt, u_pos, u_neg, row_tile=8)
    out = jax.block_until_ready(out)

    # Pure-JAX reference with the same uniforms.
    diff = jnp.asarray(DIFF_RGB_MEAN, dtype=jnp.float32).reshape(1, 3, 1, 1)
    noise = jnp.where(gt != 0.0, u_pos, u_neg)          # (N,1,H,W), tiled over channels
    ref = rgb + noise * diff

    assert out.shape == rgb.shape and out.dtype == rgb.dtype
    assert jnp.allclose(out, ref, atol=1e-6, rtol=1e-6), float(jnp.max(jnp.abs(out - ref)))

    # Also exercise the full forward (RNG drawn inside the wrapper).
    out2 = jax.block_until_ready(noise_forward(rgb, gt, jax.random.PRNGKey(1)))
    max_delta = float(jnp.max(jnp.abs(out2 - rgb)))
    assert max_delta <= max(abs(d) for d in DIFF_RGB_MEAN) + 1e-6

    print("KERNEL_OK")
</pallas_src>

<mosaic_0001>
module attributes {stable_mosaic.version = 11 : i64} {
  func.func @_noise_kernel(%arg0: i32, %arg1: i32, %arg2: memref<1x3x8x256xf32, #tpu.memory_space<vmem>>, %arg3: memref<1x1x8x256xf32, #tpu.memory_space<vmem>>, %arg4: memref<1x1x8x256xf32, #tpu.memory_space<vmem>>, %arg5: memref<1x1x8x256xf32, #tpu.memory_space<vmem>>, %arg6: memref<1x3x8x256xf32, #tpu.memory_space<vmem>>) attributes {dimension_semantics = [#tpu.dimension_semantics<parallel>, #tpu.dimension_semantics<parallel>], iteration_bounds = array<i64: 2, 2>, scalar_prefetch = 0 : i64, scratch_operands = 0 : i64, tpu.core_type = #tpu.core_type<tc>, window_params = [{transform_indices = @transform_0, window_bounds = array<i64: 1, 3, 8, 256>}, {transform_indices = @transform_1, window_bounds = array<i64: 1, 1, 8, 256>}, {transform_indices = @transform_2, window_bounds = array<i64: 1, 1, 8, 256>}, {transform_indices = @transform_3, window_bounds = array<i64: 1, 1, 8, 256>}, {transform_indices = @transform_4, window_bounds = array<i64: 1, 3, 8, 256>}]} {
    %c0 = arith.constant 0 : index
    %c0_0 = arith.constant 0 : index
    %c0_1 = arith.constant 0 : index
    %c0_2 = arith.constant 0 : index
    %0 = vector.load %arg3[%c0, %c0_0, %c0_1, %c0_2] : memref<1x1x8x256xf32, #tpu.memory_space<vmem>>, vector<1x1x8x256xf32>
    %1 = vector.shape_cast %0 : vector<1x1x8x256xf32> to vector<8x256xf32>
    %cst = arith.constant 0.000000e+00 : f32
    %2 = vector.broadcast %cst : f32 to vector<8x256xf32>
    %3 = arith.cmpf one, %1, %2 : vector<8x256xf32>
    %c0_3 = arith.constant 0 : index
    %c0_4 = arith.constant 0 : index
    %c0_5 = arith.constant 0 : index
    %c0_6 = arith.constant 0 : index
    %4 = vector.load %arg4[%c0_3, %c0_4, %c0_5, %c0_6] : memref<1x1x8x256xf32, #tpu.memory_space<vmem>>, vector<1x1x8x256xf32>
    %5 = vector.shape_cast %4 : vector<1x1x8x256xf32> to vector<8x256xf32>
    %c0_7 = arith.constant 0 : index
    %c0_8 = arith.constant 0 : index
    %c0_9 = arith.constant 0 : index
    %c0_10 = arith.constant 0 : index
    %6 = vector.load %arg5[%c0_7, %c0_8, %c0_9, %c0_10] : memref<1x1x8x256xf32, #tpu.memory_space<vmem>>, vector<1x1x8x256xf32>
    %7 = vector.shape_cast %6 : vector<1x1x8x256xf32> to vector<8x256xf32>
    %8 = arith.select %3, %5, %7 : vector<8x256xi1>, vector<8x256xf32>
    %c0_11 = arith.constant 0 : index
    %c0_12 = arith.constant 0 : index
    %c0_13 = arith.constant 0 : index
    %c0_14 = arith.constant 0 : index
    %9 = vector.load %arg2[%c0_11, %c0_12, %c0_13, %c0_14] : memref<1x3x8x256xf32, #tpu.memory_space<vmem>>, vector<1x1x8x256xf32>
    %10 = vector.shape_cast %9 : vector<1x1x8x256xf32> to vector<8x256xf32>
    %cst_15 = arith.constant 2.600000e-02 : f32
    %11 = vector.broadcast %cst_15 : f32 to vector<8x256xf32>
    %12 = arith.mulf %8, %11 : vector<8x256xf32>
    %13 = arith.addf %10, %12 : vector<8x256xf32>
    %c0_16 = arith.constant 0 : index
    %c0_17 = arith.constant 0 : index
    %c0_18 = arith.constant 0 : index
    %c0_19 = arith.constant 0 : index
    %14 = vector.load %arg6[%c0_16, %c0_17, %c0_18, %c0_19] : memref<1x3x8x256xf32, #tpu.memory_space<vmem>>, vector<1x1x8x256xf32>
    %15 = vector.shape_cast %14 : vector<1x1x8x256xf32> to vector<8x256xf32>
    %16 = vector.shape_cast %13 : vector<8x256xf32> to vector<1x1x8x256xf32>
    tpu.vector_store %arg6[%c0_16, %c0_17, %c0_18, %c0_19], %16 {strides = array<i32>} : memref<1x3x8x256xf32, #tpu.memory_space<vmem>>, vector<1x1x8x256xf32>,
    %c0_20 = arith.constant 0 : index
    %c1 = arith.constant 1 : index
    %c0_21 = arith.constant 0 : index
    %c0_22 = arith.constant 0 : index
    %17 = vector.load %arg2[%c0_20, %c1, %c0_21, %c0_22] : memref<1x3x8x256xf32, #tpu.memory_space<vmem>>, vector<1x1x8x256xf32>
    %18 = vector.shape_cast %17 : vector<1x1x8x256xf32> to vector<8x256xf32>
    %cst_23 = arith.constant 8.000000e-03 : f32
    %19 = vector.broadcast %cst_23 : f32 to vector<8x256xf32>
    %20 = arith.mulf %8, %19 : vector<8x256xf32>
    %21 = arith.addf %18, %20 : vector<8x256xf32>
    %c0_24 = arith.constant 0 : index
    %c1_25 = arith.constant 1 : index
    %c0_26 = arith.constant 0 : index
    %c0_27 = arith.constant 0 : index
    %22 = vector.load %arg6[%c0_24, %c1_25, %c0_26, %c0_27] : memref<1x3x8x256xf32, #tpu.memory_space<vmem>>, vector<1x1x8x256xf32>
    %23 = vector.shape_cast %22 : vector<1x1x8x256xf32> to vector<8x256xf32>
    %24 = vector.shape_cast %21 : vector<8x256xf32> to vector<1x1x8x256xf32>
    tpu.vector_store %arg6[%c0_24, %c1_25, %c0_26, %c0_27], %24 {strides = array<i32>} : memref<1x3x8x256xf32, #tpu.memory_space<vmem>>, vector<1x1x8x256xf32>,
    %c0_28 = arith.constant 0 : index
    %c2 = arith.constant 2 : index
    %c0_29 = arith.constant 0 : index
    %c0_30 = arith.constant 0 : index
    %25 = vector.load %arg2[%c0_28, %c2, %c0_29, %c0_30] : memref<1x3x8x256xf32, #tpu.memory_space<vmem>>, vector<1x1x8x256xf32>
    %26 = vector.shape_cast %25 : vector<1x1x8x256xf32> to vector<8x256xf32>
    %cst_31 = arith.constant -3.000000e-03 : f32
    %27 = vector.broadcast %cst_31 : f32 to vector<8x256xf32>
    %28 = arith.mulf %8, %27 : vector<8x256xf32>
    %29 = arith.addf %26, %28 : vector<8x256xf32>
    %c0_32 = arith.constant 0 : index
    %c2_33 = arith.constant 2 : index
    %c0_34 = arith.constant 0 : index
    %c0_35 = arith.constant 0 : index
    %30 = vector.load %arg6[%c0_32, %c2_33, %c0_34, %c0_35] : memref<1x3x8x256xf32, #tpu.memory_space<vmem>>, vector<1x1x8x256xf32>
    %31 = vector.shape_cast %30 : vector<1x1x8x256xf32> to vector<8x256xf32>
    %32 = vector.shape_cast %29 : vector<8x256xf32> to vector<1x1x8x256xf32>
    tpu.vector_store %arg6[%c0_32, %c2_33, %c0_34, %c0_35], %32 {strides = array<i32>} : memref<1x3x8x256xf32, #tpu.memory_space<vmem>>, vector<1x1x8x256xf32>,
    return
  }
  func.func @transform_0(%arg0: i32, %arg1: i32) -> (i32, i32, i32, i32) {
    %c0_i32 = arith.constant 0 : i32
    %c0_i32_0 = arith.constant 0 : i32
    %c0_i32_1 = arith.constant 0 : i32
    return %arg0, %c0_i32, %arg1, %c0_i32_0 : i32, i32, i32, i32
  }
  func.func @transform_1(%arg0: i32, %arg1: i32) -> (i32, i32, i32, i32) {
    %c0_i32 = arith.constant 0 : i32
    %c0_i32_0 = arith.constant 0 : i32
    %c0_i32_1 = arith.constant 0 : i32
    return %arg0, %c0_i32, %arg1, %c0_i32_0 : i32, i32, i32, i32
  }
  func.func @transform_2(%arg0: i32, %arg1: i32) -> (i32, i32, i32, i32) {
    %c0_i32 = arith.constant 0 : i32
    %c0_i32_0 = arith.constant 0 : i32
    %c0_i32_1 = arith.constant 0 : i32
    return %arg0, %c0_i32, %arg1, %c0_i32_0 : i32, i32, i32, i32
  }
  func.func @transform_3(%arg0: i32, %arg1: i32) -> (i32, i32, i32, i32) {
    %c0_i32 = arith.constant 0 : i32
    %c0_i32_0 = arith.constant 0 : i32
    %c0_i32_1 = arith.constant 0 : i32
    return %arg0, %c0_i32, %arg1, %c0_i32_0 : i32, i32, i32, i32
  }
  func.func @transform_4(%arg0: i32, %arg1: i32) -> (i32, i32, i32, i32) {
    %c0_i32 = arith.constant 0 : i32
    %c0_i32_0 = arith.constant 0 : i32
    %c0_i32_1 = arith.constant 0 : i32
    return %arg0, %c0_i32, %arg1, %c0_i32_0 : i32, i32, i32, i32
  }
}

</mosaic_0001>

<llo_original>
// kernel: tpu_custom_call.1
$region0: #{tpu_custom_call.1}
  #allocation0 [shape = 'u32[]', space=smem, size = 0x4, offset = 0x4, fixed_abs, tag = 'smem constant byte address 0x4 - core index']
  #allocation1 [shape = 'u32[144,128]{1,0:T(1,128)}', space=vmem, size = 0x12000, scoped, tag = 'internal scratch']
  %s0 = inlined_call_operand.hbm [shape: f32[2,3,16,256], index: 0, kind: input, shape index: {}]
  %s1 = inlined_call_operand.hbm [shape: f32[2,1,16,256], index: 1, kind: input, shape index: {}]
  %s2 = inlined_call_operand.hbm [shape: f32[2,1,16,256], index: 2, kind: input, shape index: {}]
  %s3 = inlined_call_operand.hbm [shape: f32[2,1,16,256], index: 3, kind: input, shape index: {}]
  %s4 = inlined_call_operand.hbm [shape: f32[2,3,16,256], index: 4, kind: output, shape index: {}]
  %s5 = sld [smem:[#allocation0]]
  $region65: #{tpu_custom_call.1} parent=0
    _
  %s7 = ssub.s32 1, %s5
  %s8 = scalar_select 0, %s7, %s5
  $region1: #{tpu_custom_call.1} parent=0
    #allocation2 [shape = 'u8[49152]{0}', space=vmem, size = 0xc000, scoped, tag = 'input window, operand 0']
    #allocation3 [shape = 's32[2]{0}', space=sflag, size = 0x8, scoped, tag = 'scoped memory for tpu_custom_call.1']
    #allocation4 [shape = 's32[2]{0}', space=sflag, size = 0x8, scoped, tag = 'scoped memory for tpu_custom_call.1']
    #allocation5 [shape = 'u8[16384]{0}', space=vmem, size = 0x4000, scoped, tag = 'input window, operand 1']
    #allocation6 [shape = 's32[2]{0}', space=sflag, size = 0x8, scoped, tag = 'scoped memory for tpu_custom_call.1']
    #allocation7 [shape = 'u8[16384]{0}', space=vmem, size = 0x4000, scoped, tag = 'input window, operand 2']
    #allocation8 [shape = 'u8[16384]{0}', space=vmem, size = 0x4000, scoped, tag = 'input window, operand 3']
    #allocation9 [shape = 's32[2]{0}', space=sflag, size = 0x8, scoped, tag = 'scoped memory for tpu_custom_call.1']
    #allocation10 [shape = 'u8[49152]{0}', space=vmem, size = 0xc000, scoped, tag = 'output window, operand 0']
    %9 = vsyncpa [#allocation3], 0
    %s10 = scalar_lea.sflag [#allocation3], 1
    %11 = vsyncpa %s10, 0
    %12 = vsyncpa [#allocation6], 0
    %s13 = scalar_lea.sflag [#allocation6], 1
    %14 = vsyncpa %s13, 0
    %15 = vsyncpa [#allocation9], 0
    %s16 = scalar_lea.sflag [#allocation9], 1
    %17 = vsyncpa %s16, 0
    %18 = vsyncpa [#allocation4], 0
    %s19 = scalar_lea.sflag [#allocation4], 1
    %20 = vsyncpa %s19, 0
    loop: start=0, step=1, limit=6
    $region2: #{tpu_custom_call.1} parent=1 // loop_pre_header
      _
    $region3: #{tpu_custom_call.1} parent=1 // loop_header
      %s22 = sphi 0, %s26
      %p23 = scmp.ge.s32.totalorder %s22, 6
      %s29 = sphi 0, %s41
      %s30 = sphi 0, %s37
      %s31 = sphi 0, %s29
      %s32 = sphi 0, %s30
      %s33 = sphi 0, %s31
      %s34 = sphi 0, %s32
      %s46 = sphi 0, %s48
      %s49 = sphi 0, %s46
      %s50 = sphi 0, %s49
      %s66 = sphi 0, %s50
      %s74 = sphi 0, %s76
      %s77 = sphi 0, %s74
      %s78 = sphi 0, %s77
      %s94 = sphi 0, %s78
      %s102 = sphi 0, %s104
      %s105 = sphi 0, %s102
      %s106 = sphi 0, %s105
      %s122 = sphi 0, %s106
      %s130 = sphi 0, %s132
      %s133 = sphi 0, %s130
      %s134 = sphi 0, %s133
      %s150 = sphi 0, %s134
      %s158 = sphi 0, %s160
      %s161 = sphi 0, %s158
      %s162 = sphi 0, %s161
      %s178 = sphi 0, %s162
    $region4: #{tpu_custom_call.1} parent=1 // loop_header_branch
      %25 = sbr.rel (%p23) target = $region8
    $region5: #{tpu_custom_call.1} parent=1 // loop_body
      %s27 = ssub.s32 %s22, 1
      %s28 = ssub.s32 %s22, 2
      %s35 = sadd.s32 1, %s30
      %p36 = scmp.ge.s32.totalorder %s35, 2
      %s37 = scalar_select %p36, 0, %s35
      %s38 = sadd.s32 1, %s29
      %s39 = scalar_select %p36, %s38, %s29
      %p40 = scmp.ge.s32.totalorder %s39, 2
      %s41 = scalar_select %p40, 0, %s39
      %s42 = ssub.s32 %s29, %s41
      %s43 = ssub.s32 %s30, %s37
      %s44 = sor.u32 %s42, %s43
      %p45 = scmp.eq.s32.totalorder %s44, 0
      %s47 = sadd.s32 %s46, 1
      %s48 = scalar_select %p45, %s46, %s47
      %p51 = pneg %p45
      %p52 = scmp.eq.s32.totalorder %s22, 3
      %p53 = por %p51, %p52
      %p54 = scmp.ne.s32.totalorder %s46, %s49
      %p55 = scmp.eq.s32.totalorder %s22, 0
      %p56 = por %p54, %p55
      %p57 = scmp.ne.s32.totalorder %s46, %s49
      %p58 = scmp.eq.s32.totalorder %s27, 3
      %p59 = por %p57, %p58
      %p60 = scmp.ne.s32.totalorder %s49, %s50
      %p61 = scmp.eq.s32.totalorder %s27, 0
      %p62 = por %p60, %p61
      %p63 = scmp.ne.s32.totalorder %s49, %s50
      %p64 = scmp.eq.s32.totalorder %s28, 3
      %p65 = por %p63, %p64
      %p67 = scmp.ne.s32.totalorder %s50, %s66
      %p68 = scmp.eq.s32.totalorder %s28, 0
      %p69 = por %p67, %p68
      %s70 = ssub.s32 %s29, %s41
      %s71 = ssub.s32 %s30, %s37
      %s72 = sor.u32 %s70, %s71
      %p73 = scmp.eq.s32.totalorder %s72, 0
      %s75 = sadd.s32 %s74, 1
      %s76 = scalar_select %p73, %s74, %s75
      %p79 = pneg %p73
      %p80 = scmp.eq.s32.totalorder %s22, 3
      %p81 = por %p79, %p80
      %p82 = scmp.ne.s32.totalorder %s74, %s77
      %p83 = scmp.eq.s32.totalorder %s22, 0
      %p84 = por %p82, %p83
      %p85 = scmp.ne.s32.totalorder %s74, %s77
      %p86 = scmp.eq.s32.totalorder %s27, 3
      %p87 = por %p85, %p86
      %p88 = scmp.ne.s32.totalorder %s77, %s78
      %p89 = scmp.eq.s32.totalorder %s27, 0
      %p90 = por %p88, %p89
      %p91 = scmp.ne.s32.totalorder %s77, %s78
      %p92 = scmp.eq.s32.totalorder %s28, 3
      %p93 = por %p91, %p92
      %p95 = scmp.ne.s32.totalorder %s78, %s94
      %p96 = scmp.eq.s32.totalorder %s28, 0
      %p97 = por %p95, %p96
      %s98 = ssub.s32 %s29, %s41
      %s99 = ssub.s32 %s30, %s37
      %s100 = sor.u32 %s98, %s99
      %p101 = scmp.eq.s32.totalorder %s100, 0
      %s103 = sadd.s32 %s102, 1
      %s104 = scalar_select %p101, %s102, %s103
      %p107 = pneg %p101
      %p108 = scmp.eq.s32.totalorder %s22, 3
      %p109 = por %p107, %p108
      %p110 = scmp.ne.s32.totalorder %s102, %s105
      %p111 = scmp.eq.s32.totalorder %s22, 0
      %p112 = por %p110, %p111
      %p113 = scmp.ne.s32.totalorder %s102, %s105
      %p114 = scmp.eq.s32.totalorder %s27, 3
      %p115 = por %p113, %p114
      %p116 = scmp.ne.s32.totalorder %s105, %s106
      %p117 = scmp.eq.s32.totalorder %s27, 0
      %p118 = por %p116, %p117
      %p119 = scmp.ne.s32.totalorder %s105, %s106
      %p120 = scmp.eq.s32.totalorder %s28, 3
      %p121 = por %p119, %p120
      %p123 = scmp.ne.s32.totalorder %s106, %s122
      %p124 = scmp.eq.s32.totalorder %s28, 0
      %p125 = por %p123, %p124
      %s126 = ssub.s32 %s29, %s41
      %s127 = ssub.s32 %s30, %s37
      %s128 = sor.u32 %s126, %s127
      %p129 = scmp.eq.s32.totalorder %s128, 0
      %s131 = sadd.s32 %s130, 1
      %s132 = scalar_select %p129, %s130, %s131
      %p135 = pneg %p129
      %p136 = scmp.eq.s32.totalorder %s22, 3
      %p137 = por %p135, %p136
      %p138 = scmp.ne.s32.totalorder %s130, %s133
      %p139 = scmp.eq.s32.totalorder %s22, 0
      %p140 = por %p138, %p139
      %p141 = scmp.ne.s32.totalorder %s130, %s133
      %p142 = scmp.eq.s32.totalorder %s27, 3
      %p143 = por %p141, %p142
      %p144 = scmp.ne.s32.totalorder %s133, %s134
      %p145 = scmp.eq.s32.totalorder %s27, 0
      %p146 = por %p144, %p145
      %p147 = scmp.ne.s32.totalorder %s133, %s134
      %p148 = scmp.eq.s32.totalorder %s28, 3
      %p149 = por %p147, %p148
      %p151 = scmp.ne.s32.totalorder %s134, %s150
      %p152 = scmp.eq.s32.totalorder %s28, 0
      %p153 = por %p151, %p152
      %s154 = ssub.s32 %s29, %s41
      %s155 = ssub.s32 %s30, %s37
      %s156 = sor.u32 %s154, %s155
      %p157 = scmp.eq.s32.totalorder %s156, 0
      %s159 = sadd.s32 %s158, 1
      %s160 = scalar_select %p157, %s158, %s159
      %p163 = pneg %p157
      %p164 = scmp.eq.s32.totalorder %s22, 3
      %p165 = por %p163, %p164
      %p166 = scmp.ne.s32.totalorder %s158, %s161
      %p167 = scmp.eq.s32.totalorder %s22, 0
      %p168 = por %p166, %p167
      %p169 = scmp.ne.s32.totalorder %s158, %s161
      %p170 = scmp.eq.s32.totalorder %s27, 3
      %p171 = por %p169, %p170
      %p172 = scmp.ne.s32.totalorder %s161, %s162
      %p173 = scmp.eq.s32.totalorder %s27, 0
      %p174 = por %p172, %p173
      %p175 = scmp.ne.s32.totalorder %s161, %s162
      %p176 = scmp.eq.s32.totalorder %s28, 3
      %p177 = por %p175, %p176
      %p179 = scmp.ne.s32.totalorder %s162, %s178
      %p180 = scmp.eq.s32.totalorder %s28, 0
      %p181 = por %p179, %p180
      %p182 = scmp.le.s32.totalorder 1, %s22
      %p183 = scmp.lt.s32.totalorder %s22, 5
      %p184 = pnand %p182, %p183
      %p185 = pneg %p184
      // Predicated region
      $region9: #{tpu_custom_call.1} parent=5 // pred_check
        _
      $region10: #{tpu_custom_call.1} parent=5 // pred_check_branch
        %187 = sbr.rel (%p184) target = $region12
      $region11: #{tpu_custom_call.1} parent=5 // pred_region
        %s188 = ssub.s32 %s22, 1
      $region12: #{tpu_custom_call.1} parent=5 // pred_fallthru
        _
      %p189 = scmp.lt.s32.totalorder %s22, 4
      // Predicated region
      $region13: #{tpu_custom_call.1} parent=5 // pred_check
        %p190 = pneg %p189
      $region14: #{tpu_custom_call.1} parent=5 // pred_check_branch
        %192 = sbr.rel (%p190) target = $region16
      $region15: #{tpu_custom_call.1} parent=5 // pred_region
        // Predicated region
        $region17: #{tpu_custom_call.1} parent=15 // pred_check
          %p193 = pneg %p56
        $region18: #{tpu_custom_call.1} parent=15 // pred_check_branch
          %195 = sbr.rel (%p193) target = $region20
        $region19: #{tpu_custom_call.1} parent=15 // pred_region
          %s196 = sand.u32 %s46, 1
          %s197 = scalar_lea.sflag [#allocation3], %s196
          %s198 = sand.u32 %s46, 1
          %s199 = smul.addr %s198, 48
          %s200 = scalar_lea.vmem [#allocation2], %s199
          %s202 = ssub.s32 768, 768
          %203 = vsyncadd %s197, %s202
          %s204 = smul.addr %s30, 2
          %s205 = smul.addr %s29, 12
          %s206 = sadd.s32 %s204, %s205
          %s207 = smul.addr %s206, 128
          %s208 = scalar_lea.hbm %s0, %s207
          %s209 = sshll.u32 %s200, 4
          %s210 = int_to_ptr.vmem [resolvable:$true] %s209
          %215 = dma.hbm_to_vmem [thread:$0]  %s208, 768, %s210, %s197, 512, 256, 16
        $region20: #{tpu_custom_call.1} parent=15 // pred_fallthru
          _
        // Predicated region
        $region21: #{tpu_custom_call.1} parent=15 // pred_check
          %p216 = pneg %p84
        $region22: #{tpu_custom_call.1} parent=15 // pred_check_branch
          %218 = sbr.rel (%p216) target = $region24
        $region23: #{tpu_custom_call.1} parent=15 // pred_region
          %s219 = sand.u32 %s22, 1
          %s220 = scalar_lea.sflag [#allocation6], %s219
          %s221 = sand.u32 %s74, 1
          %s222 = smul.addr %s221, 16
          %s223 = scalar_lea.vmem [#allocation5], %s222
          %s225 = ssub.s32 256, 256
          %226 = vsyncadd %s220, %s225
          %s227 = smul.addr %s30, 2
          %s228 = smul.addr %s29, 4
          %s229 = sadd.s32 %s227, %s228
          %s230 = smul.addr %s229, 128
          %s231 = scalar_lea.hbm %s1, %s230
          %s233 = sshll.u32 %s223, 4
          %s234 = int_to_ptr.vmem [resolvable:$true] %s233
          %236 = dma.hbm_to_vmem [thread:$0]  %s231, 256, %s234, %s220
        $region24: #{tpu_custom_call.1} parent=15 // pred_fallthru
          _
        // Predicated region
        $region25: #{tpu_custom_call.1} parent=15 // pred_check
          %p237 = pneg %p112
        $region26: #{tpu_custom_call.1} parent=15 // pred_check_branch
          %239 = sbr.rel (%p237) target = $region28
        $region27: #{tpu_custom_call.1} parent=15 // pred_region
          %s240 = sand.u32 %s22, 1
          %s241 = scalar_lea.sflag [#allocation6], %s240
          %s242 = sand.u32 %s102, 1
          %s243 = smul.addr %s242, 16
          %s244 = scalar_lea.vmem [#allocation7], %s243
          %s246 = ssub.s32 256, 256
          %247 = vsyncadd %s241, %s246
          %s248 = smul.addr %s30, 2
          %s249 = smul.addr %s29, 4
          %s250 = sadd.s32 %s248, %s249
          %s251 = smul.addr %s250, 128
          %s252 = scalar_lea.hbm %s2, %s251
          %s254 = sshll.u32 %s244, 4
          %s255 = int_to_ptr.vmem [resolvable:$true] %s254
          %257 = dma.hbm_to_vmem [thread:$0]  %s252, 256, %s255, %s241
        $region28: #{tpu_custom_call.1} parent=15 // pred_fallthru
          _
        // Predicated region
        $region29: #{tpu_custom_call.1} parent=15 // pred_check
          %p258 = pneg %p140
        $region30: #{tpu_custom_call.1} parent=15 // pred_check_branch
          %260 = sbr.rel (%p258) target = $region32
        $region31: #{tpu_custom_call.1} parent=15 // pred_region
          %s261 = sand.u32 %s130, 1
          %s262 = scalar_lea.sflag [#allocation9], %s261
          %s263 = sand.u32 %s130, 1
          %s264 = smul.addr %s263, 16
          %s265 = scalar_lea.vmem [#allocation8], %s264
          %s267 = ssub.s32 256, 256
          %268 = vsyncadd %s262, %s267
          %s269 = smul.addr %s30, 2
          %s270 = smul.addr %s29, 4
          %s271 = sadd.s32 %s269, %s270
          %s272 = smul.addr %s271, 128
          %s273 = scalar_lea.hbm %s3, %s272
          %s275 = sshll.u32 %s265, 4
          %s276 = int_to_ptr.vmem [resolvable:$true] %s275
          %278 = dma.hbm_to_vmem [thread:$0]  %s273, 256, %s276, %s262
        $region32: #{tpu_custom_call.1} parent=15 // pred_fallthru
          _
      $region16: #{tpu_custom_call.1} parent=5 // pred_fallthru
        _
      %p279 = scmp.le.s32.totalorder 1, %s22
      %p280 = scmp.lt.s32.totalorder %s22, 5
      %p281 = pnand %p279, %p280
      %p282 = pneg %p281
      // Predicated region
      $region33: #{tpu_custom_call.1} parent=5 // pred_check
        _
      $region34: #{tpu_custom_call.1} parent=5 // pred_check_branch
        %284 = sbr.rel (%p281) target = $region36
      $region35: #{tpu_custom_call.1} parent=5 // pred_region
        %s285 = ssub.s32 %s22, 1
        %s286 = sand.u32 %s49, 1
        %s287 = scalar_lea.sflag [#allocation3], %s286
        %s288 = sand.u32 %s49, 1
        %s289 = smul.addr %s288, 48
        %s290 = scalar_lea.vmem [#allocation2], %s289
        // Predicated region
        $region37: #{tpu_custom_call.1} parent=35 // pred_check
          %p291 = pneg %p62
        $region38: #{tpu_custom_call.1} parent=35 // pred_check_branch
          %293 = sbr.rel (%p291) target = $region40
        $region39: #{tpu_custom_call.1} parent=35 // pred_region
          %294 = dma.done %s287, 768
        $region40: #{tpu_custom_call.1} parent=35 // pred_fallthru
          _
        %s295 = sand.u32 %s27, 1
        %s296 = scalar_lea.sflag [#allocation6], %s295
        %s297 = sand.u32 %s77, 1
        %s298 = smul.addr %s297, 16
        %s299 = scalar_lea.vmem [#allocation5], %s298
        // Predicated region
        $region41: #{tpu_custom_call.1} parent=35 // pred_check
          %p300 = pneg %p90
        $region42: #{tpu_custom_call.1} parent=35 // pred_check_branch
          %302 = sbr.rel (%p300) target = $region44
        $region43: #{tpu_custom_call.1} parent=35 // pred_region
          %303 = dma.done %s296, 256
        $region44: #{tpu_custom_call.1} parent=35 // pred_fallthru
          _
        %s304 = sand.u32 %s27, 1
        %s305 = scalar_lea.sflag [#allocation6], %s304
        %s306 = sand.u32 %s105, 1
        %s307 = smul.addr %s306, 16
        %s308 = scalar_lea.vmem [#allocation7], %s307
        // Predicated region
        $region45: #{tpu_custom_call.1} parent=35 // pred_check
          %p309 = pneg %p118
        $region46: #{tpu_custom_call.1} parent=35 // pred_check_branch
          %311 = sbr.rel (%p309) target = $region48
        $region47: #{tpu_custom_call.1} parent=35 // pred_region
          %312 = dma.done %s305, 256
        $region48: #{tpu_custom_call.1} parent=35 // pred_fallthru
          _
        %s313 = sand.u32 %s133, 1
        %s314 = scalar_lea.sflag [#allocation9], %s313
        %s315 = sand.u32 %s133, 1
        %s316 = smul.addr %s315, 16
        %s317 = scalar_lea.vmem [#allocation8], %s316
        // Predicated region
        $region49: #{tpu_custom_call.1} parent=35 // pred_check
          %p318 = pneg %p146
        $region50: #{tpu_custom_call.1} parent=35 // pred_check_branch
          %320 = sbr.rel (%p318) target = $region52
        $region51: #{tpu_custom_call.1} parent=35 // pred_region
          %321 = dma.done %s314, 256
        $region52: #{tpu_custom_call.1} parent=35 // pred_fallthru
          _
        %s322 = sand.u32 %s49, 1
        %s323 = scalar_lea.sflag [#allocation3], %s322
        %s324 = sand.u32 %s49, 1
        %s325 = smul.addr %s324, 48
        %s326 = scalar_lea.vmem [#allocation2], %s325
        %p327 = pneg %p62
        %p328 = pneg %p59
        %s329 = sand.u32 %s27, 1
        %s330 = scalar_lea.sflag [#allocation6], %s329
        %s331 = sand.u32 %s77, 1
        %s332 = smul.addr %s331, 16
        %s333 = scalar_lea.vmem [#allocation5], %s332
        %p334 = pneg %p90
        %p335 = pneg %p87
        %s336 = sand.u32 %s27, 1
        %s337 = scalar_lea.sflag [#allocation6], %s336
        %s338 = sand.u32 %s105, 1
        %s339 = smul.addr %s338, 16
        %s340 = scalar_lea.vmem [#allocation7], %s339
        %p341 = pneg %p118
        %p342 = pneg %p115
        %s343 = sand.u32 %s133, 1
        %s344 = scalar_lea.sflag [#allocation9], %s343
        %s345 = sand.u32 %s133, 1
        %s346 = smul.addr %s345, 16
        %s347 = scalar_lea.vmem [#allocation8], %s346
        %p348 = pneg %p146
        %p349 = pneg %p143
        %p350 = pneg %p174
        %p351 = pneg %p171
        %s352 = sand.u32 %s161, 1
        %s353 = scalar_lea.sflag [#allocation4], %s352
        %s354 = sand.u32 %s161, 1
        %s355 = smul.addr %s354, 48
        %s356 = scalar_lea.vmem [#allocation10], %s355
        %v357 = vld [vmem:[%s299] sm:$0xff]
        %v358 = vld [vmem:[%s299 + $0x8] sm:$0xff]
        %vm359 = vcmp.ne.f32.partialorder %v357, 0.0
        %vm360 = vcmp.ne.f32.partialorder %v358, 0.0
        %v361 = vld [vmem:[%s308] sm:$0xff]
        %v362 = vld [vmem:[%s308 + $0x8] sm:$0xff]
        %v363 = vld [vmem:[%s317] sm:$0xff]
        %v364 = vld [vmem:[%s317 + $0x8] sm:$0xff]
        %v365 = vsel %vm359, %v361, %v363
        %v366 = vsel %vm360, %v362, %v364
        %v367 = vld [vmem:[%s290] sm:$0xff]
        %v368 = vld [vmem:[%s290 + $0x8] sm:$0xff]
        %v369 = vmul.f32 %v365, 0.026
        %v370 = vmul.f32 %v366, 0.026
        %v371 = vadd.f32 %v367, %v369
        %v372 = vadd.f32 %v368, %v370
        %373 = vst [vmem:[%s356] sm:$0xff] %v371
        %374 = vst [vmem:[%s356 + $0x8] sm:$0xff] %v372
        %s375 = scalar_lea.vmem %s290, 16 [#allocation2]
        %v376 = vld [vmem:[%s375] sm:$0xff]
        %v377 = vld [vmem:[%s375 + $0x8] sm:$0xff]
        %v378 = vmul.f32 %v365, 0.008
        %v379 = vmul.f32 %v366, 0.008
        %v380 = vadd.f32 %v376, %v378
        %v381 = vadd.f32 %v377, %v379
        %s382 = scalar_lea.vmem %s356, 16 [#allocation10]
        %383 = vst [vmem:[%s382] sm:$0xff] %v380
        %384 = vst [vmem:[%s382 + $0x8] sm:$0xff] %v381
        %s385 = scalar_lea.vmem %s290, 32 [#allocation2]
        %v386 = vld [vmem:[%s385] sm:$0xff]
        %v387 = vld [vmem:[%s385 + $0x8] sm:$0xff]
        %v388 = vmul.f32 %v365, -0.003
        %v389 = vmul.f32 %v366, -0.003
        %v390 = vadd.f32 %v386, %v388
        %v391 = vadd.f32 %v387, %v389
        %s392 = scalar_lea.vmem %s356, 32 [#allocation10]
        %393 = vst [vmem:[%s392] sm:$0xff] %v390
        %394 = vst [vmem:[%s392 + $0x8] sm:$0xff] %v391
        %s395 = sand.u32 %s161, 1
        %s396 = scalar_lea.sflag [#allocation4], %s395
        %s397 = sand.u32 %s161, 1
        %s398 = smul.addr %s397, 48
        %s399 = scalar_lea.vmem [#allocation10], %s398
        // Predicated region
        $region53: #{tpu_custom_call.1} parent=35 // pred_check
          %p400 = pneg %p171
        $region54: #{tpu_custom_call.1} parent=35 // pred_check_branch
          %402 = sbr.rel (%p400) target = $region56
        $region55: #{tpu_custom_call.1} parent=35 // pred_region
          %s404 = ssub.s32 768, 768
          %405 = vsyncadd %s396, %s404
          %s406 = smul.addr %s32, 2
          %s407 = smul.addr %s31, 12
          %s408 = sadd.s32 %s406, %s407
          %s409 = smul.addr %s408, 128
          %s410 = scalar_lea.hbm %s4, %s409
          %s411 = sshll.u32 %s399, 4
          %s412 = int_to_ptr.vmem [resolvable:$true] %s411
          %417 = dma.vmem_to_hbm [thread:$0]  %s412, 768, %s410, %s396, 256, 512, 16
        $region56: #{tpu_custom_call.1} parent=35 // pred_fallthru
          _
      $region36: #{tpu_custom_call.1} parent=5 // pred_fallthru
        _
      %p418 = scmp.le.s32.totalorder 2, %s22
      // Predicated region
      $region57: #{tpu_custom_call.1} parent=5 // pred_check
        %p419 = pneg %p418
      $region58: #{tpu_custom_call.1} parent=5 // pred_check_branch
        %421 = sbr.rel (%p419) target = $region60
      $region59: #{tpu_custom_call.1} parent=5 // pred_region
        %s422 = ssub.s32 %s22, 2
        // Predicated region
        $region61: #{tpu_custom_call.1} parent=59 // pred_check
          %p423 = pneg %p177
        $region62: #{tpu_custom_call.1} parent=59 // pred_check_branch
          %425 = sbr.rel (%p423) target = $region64
        $region63: #{tpu_custom_call.1} parent=59 // pred_region
          %s426 = sand.u32 %s162, 1
          %s427 = scalar_lea.sflag [#allocation4], %s426
          %s428 = sand.u32 %s162, 1
          %s429 = smul.addr %s428, 48
          %s430 = scalar_lea.vmem [#allocation10], %s429
          %431 = dma.done %s427, 768
        $region64: #{tpu_custom_call.1} parent=59 // pred_fallthru
          _
      $region60: #{tpu_custom_call.1} parent=5 // pred_fallthru
        _
    $region6: #{tpu_custom_call.1} parent=1 // loop_footer
      %s26 = sadd.s32 1, %s22
    $region7: #{tpu_custom_call.1} parent=1 // loop_footer_branch
      %21 = sbr.rel target = $region3
    $region8: #{tpu_custom_call.1} parent=1 // loop_exit
      _
    %432 = vsyncpa [#allocation3], 1
    %s433 = scalar_lea.sflag [#allocation3], 1
    %434 = vsyncpa %s433, 1
    %435 = vsyncpa [#allocation6], 1
    %s436 = scalar_lea.sflag [#allocation6], 1
    %437 = vsyncpa %s436, 1
    %438 = vsyncpa [#allocation9], 1
    %s439 = scalar_lea.sflag [#allocation9], 1
    %440 = vsyncpa %s439, 1
    %441 = vsyncpa [#allocation4], 1
    %s442 = scalar_lea.sflag [#allocation4], 1
    %443 = vsyncpa %s442, 1

</llo_original>
